<compile_context>
chip_gen: v7x
topology: tpu7x:2x2x1
jax: 0.10.0
libtpu: 0.0.40
codegen_flags: <defaults>
</compile_context>

<pallas_src>
import functools

import jax
import jax.numpy as jnp
from jax.experimental import pallas as pl
from jax.experimental.pallas import tpu as pltpu

_EPS = 1e-8                 # nn.CosineSimilarity default eps
_EPS2 = _EPS * _EPS
_LANE = 1024                # lane width of the packed slab (multiple of 128, even)
_TILE_ROWS = 512            # f32 rows per grid step -> 2 MiB per input block


def _round_up(v, m):
    return -(-v // m) * m


def _fvloss_kernel(x_ref, y_ref, out_ref, acc_ref, *, split, tiles_per_core,
                   tile_r, rows_valid, ragged, inv_scale):
    c = pl.program_id(0)          # TensorCore-parallel axis
    i = pl.program_id(1)          # sequential reduction axis (per core)

    @pl.when(i == 0)
    def _init():
        acc_ref[...] = jnp.zeros_like(acc_ref)

    if split:
        # Deinterleaved layout: refs are (2, tile_r, lane); [0] holds the even
        # component of every pair, [1] the odd one (pair index = row*lane+lane_id).
        # No rolls, no parity mask, every lane is a real pair.
        xe = x_ref[0].astype(jnp.float32)
        xo = x_ref[1].astype(jnp.float32)
        ye = y_ref[0].astype(jnp.float32)
        yo = y_ref[1].astype(jnp.float32)
        dot = xe * ye + xo * yo
        xsq = xe * xe + xo * xo
        ysq = ye * ye + yo * yo
    else:
        # Interleaved zero-copy layout: lanes (2k, 2k+1) hold pair k.  Pair
        # sums land on the odd lane after a rotate-by-1 add (lane rotation
        # rides the XLU slot; this kernel is HBM-bound on v5e/v6e).
        xv = x_ref[...].astype(jnp.float32)
        yv = y_ref[...].astype(jnp.float32)
        xy = xv * yv
        xx = xv * xv
        yy = yv * yv
        dot = xy + jnp.roll(xy, 1, axis=1)
        xsq = xx + jnp.roll(xx, 1, axis=1)
        ysq = yy + jnp.roll(yy, 1, axis=1)

    # denom = sqrt(max(xsq,eps^2)) * sqrt(max(ysq,eps^2)) via two EUP rsqrts:
    # no overflow of xsq*ysq, stays finite, cos in [-1, 1].
    cos = (dot
           * jax.lax.rsqrt(jnp.maximum(xsq, _EPS2))
           * jax.lax.rsqrt(jnp.maximum(ysq, _EPS2)))
    vals = 1.0 - cos              # == |cos - 1| up to f32 rounding (cos <= 1)

    if ragged:
        # Blocks overhanging the slab contain stale/unspecified VMEM rows.
        # rows_valid is a Python constant, so this masking code is only
        # emitted when the grid coverage really exceeds the data.
        rid = ((c * tiles_per_core + i) * tile_r
               + jax.lax.broadcasted_iota(jnp.int32, vals.shape, 0))
        vals = jnp.where(rid < rows_valid, vals, 0.0)

    # Fold the tile into the small (8, lane) accumulator: pure inter-vreg adds
    # plus one 32 KiB read-modify-write per tile.
    acc_ref[...] += vals.reshape(tile_r // 8, 8, vals.shape[-1]).sum(axis=0)

    @pl.when(i == tiles_per_core - 1)
    def _finalize():
        a = acc_ref[...]
        if not split:
            # Deferred parity mask: only odd lanes carry per-pair values.
            lane_ids = jax.lax.broadcasted_iota(jnp.int32, a.shape, 1)
            a = jnp.where(lane_ids % 2 == 1, a, 0.0)
        out_ref[0, 0] = jnp.sum(a) * inv_scale


def feature_vector_loss(x, y, loss_type="mse", size_average=True, *,
                        lane=_LANE, tile_rows=_TILE_ROWS):
    """JAX/Pallas equivalent of FeatureVectorLoss(type=loss_type).forward(x, y)."""
    if loss_type not in ("mse", "abs"):
        # TODO(synk): 'L2_norm' branch unimplementable as written in the source.
        raise NotImplementedError("only 'mse'/'abs' are supported")
    assert lane % 128 == 0 and lane % 2 == 0

    b = x.shape[0]
    xf = jnp.reshape(x, (b, -1))      # keep native dtype (bf16 stays 16-bit in HBM)
    yf = jnp.reshape(y, (b, -1))
    ndims = xf.shape[1]
    npairs = ndims // 2
    if npairs < 1:
        raise ValueError("need at least one (even, odd) feature pair")
    total_pairs = b * npairs
    itemsize = jnp.dtype(xf.dtype).itemsize
    inv_scale = 1.0 / (b * npairs) if size_average else 1.0

    # Keep the per-step DMA chunk ~2-4 MiB even for 16-bit inputs.
    tile_rows = tile_rows * max(1, 4 // itemsize)

    # Fast path: the flattened inputs already form a lane-dense slab -> free
    # reshape, zero extra HBM traffic (pairs stay interleaved in lanes).
    fast = (ndims % 2 == 0) and ((b * ndims) % lane == 0)

    if fast:
        split = False
        rows = (b * ndims) // lane                  # data rows in the slab
        xs = xf.reshape(rows, lane)
        ys = yf.reshape(rows, lane)
    else:
        # A pack copy is unavoidable here (odd ndims and/or ragged flat size);
        # since it is being paid anyway, deinterleave pair components into two
        # stacked half-slabs (kills rolls + parity mask, halves per-byte work).
        split = True
        rows = max(1, pl.cdiv(total_pairs, lane))
        pad = rows * lane - total_pairs             # < lane pairs
        def pack(a):
            p = a[:, :2 * npairs].reshape(total_pairs, 2)
            if pad:
                # (1,1) vs (1,1) pairs -> cos == 1 -> exactly ~zero loss contribution
                p = jnp.concatenate([p, jnp.ones((pad, 2), dtype=a.dtype)], axis=0)
            return p.reshape(rows, lane, 2).transpose(2, 0, 1)   # (2, rows, lane)
        xs = pack(xf)
        ys = pack(yf)

    tile_r = max(8, min(_round_up(tile_rows, 8), _round_up(rows, 8)))
    n_blocks = pl.cdiv(rows, tile_r)
    # Megacore: split row-blocks across 2 TensorCores via a leading 'parallel'
    # axis; one partial sum per core.  Harmless (sequential) on 1-TC chips.
    n_cores = 2 if n_blocks >= 2 else 1
    tiles_per_core = pl.cdiv(n_blocks, n_cores)
    ragged = (n_cores * tiles_per_core * tile_r) != rows
    last_block = n_blocks - 1

    def row_map2(c, i):
        return (jnp.minimum(c * tiles_per_core + i, last_block), 0)

    def row_map3(c, i):
        return (0, jnp.minimum(c * tiles_per_core + i, last_block), 0)

    if split:
        in_specs = [pl.BlockSpec((2, tile_r, lane), row_map3),
                    pl.BlockSpec((2, tile_r, lane), row_map3)]
        block_bytes = 2 * 2 * tile_r * lane * itemsize
    else:
        in_specs = [pl.BlockSpec((tile_r, lane), row_map2),
                    pl.BlockSpec((tile_r, lane), row_map2)]
        block_bytes = 2 * tile_r * lane * itemsize

    kernel = functools.partial(
        _fvloss_kernel, split=split, tiles_per_core=tiles_per_core,
        tile_r=tile_r, rows_valid=rows, ragged=ragged, inv_scale=inv_scale)

    # Double-buffered inputs + 32 KiB accumulator + slack; capped well below
    # the 64 MiB physical VMEM of a v7x TensorCore.
    vmem_limit = int(min(max(2 * block_bytes + (8 << 20), 16 << 20), 48 << 20))

    partials = pl.pallas_call(
        kernel,
        out_shape=jax.ShapeDtypeStruct((n_cores, 1), jnp.float32),
        grid_spec=pltpu.PrefetchScalarGridSpec(
            num_scalar_prefetch=0,
            grid=(n_cores, tiles_per_core),
            in_specs=in_specs,
            out_specs=pl.BlockSpec((1, 1), lambda c, i: (c, 0),
                                   memory_space=pltpu.MemorySpace.SMEM),
            scratch_shapes=[pltpu.VMEM((8, lane), jnp.float32)],
        ),
        compiler_params=pltpu.CompilerParams(
            dimension_semantics=("parallel", "arbitrary"),
            vmem_limit_bytes=vmem_limit,
        ),
        cost_estimate=pl.CostEstimate(
            flops=14 * int(xs.size),
            transcendentals=2 * int(xs.size),
            bytes_accessed=int((xs.size + ys.size) * itemsize) + 4 * n_cores,
        ),
    )(xs, ys)
    return jnp.sum(partials)


def _reference_jax(x, y, size_average=True):
    """Pure-JAX mirror of the PyTorch forward (vectorized), for verification."""
    b = x.shape[0]
    xf = jnp.reshape(x, (b, -1)).astype(jnp.float32)
    yf = jnp.reshape(y, (b, -1)).astype(jnp.float32)
    ndims = xf.shape[1]
    npairs = ndims // 2
    xp = xf[:, :2 * npairs].reshape(b, npairs, 2)
    yp = yf[:, :2 * npairs].reshape(b, npairs, 2)
    dot = jnp.sum(xp * yp, axis=-1)
    denom = jnp.sqrt(jnp.maximum(
        jnp.sum(xp * xp, -1) * jnp.sum(yp * yp, -1), _EPS * _EPS))
    reg = jnp.sum(jnp.abs(dot / denom - 1.0))
    if size_average:
        reg = reg / b / npairs
    return reg


if __name__ == "__main__":
    key = jax.random.PRNGKey(0)
    k1, k2, k3, k4, k5, k6, k7, k8 = jax.random.split(key, 8)

    def check(name, loss, ref):
        loss = float(jax.block_until_ready(loss))
        ref = float(jax.block_until_ready(ref))
        tol = 1e-3 * max(1.0, abs(ref))
        assert abs(loss - ref) < tol, (name, loss, ref)

    # 1) Module-shaped input [batch, 1, ndims]; pack/deinterleave path, single tile.
    x1 = jax.random.normal(k1, (2, 1, 32), dtype=jnp.float32)
    y1 = jax.random.normal(k2, (2, 1, 32), dtype=jnp.float32)
    check("pack-single",
          feature_vector_loss(x1, y1, "mse", True),
          _reference_jax(x1, y1, True))

    # 2) Zero-copy fast path: multi-tile, 2-core grid, ragged last block.
    x2 = jax.random.normal(k3, (34, 1, 128), dtype=jnp.float32)
    y2 = jax.random.normal(k4, (34, 1, 128), dtype=jnp.float32)
    check("fast-ragged",
          feature_vector_loss(x2, y2, "abs", True, lane=128, tile_rows=8),
          _reference_jax(x2, y2, True))

    # 3) Odd ndims (trailing element dropped): deinterleave path, multi-tile, 2-core.
    x3 = jax.random.normal(k5, (40, 1, 129), dtype=jnp.float32)
    y3 = jax.random.normal(k6, (40, 1, 129), dtype=jnp.float32)
    check("pack-multitile",
          feature_vector_loss(x3, y3, "mse", True, lane=128, tile_rows=8),
          _reference_jax(x3, y3, True))

    # 4) bf16 inputs stay 16-bit in HBM (kernel upcasts in VMEM); size_average=False.
    x4 = jax.random.normal(k7, (16, 1, 64), dtype=jnp.bfloat16)
    y4 = jax.random.normal(k8, (16, 1, 64), dtype=jnp.bfloat16)
    check("bf16-fast",
          feature_vector_loss(x4, y4, "abs", size_average=False),
          _reference_jax(x4, y4, size_average=False))

    print("KERNEL_OK")
</pallas_src>

<mosaic_0001>
module attributes {stable_mosaic.version = 11 : i64} {
  func.func @_fvloss_kernel(%arg0: i32, %arg1: i32, %arg2: memref<2x8x1024xf32, #tpu.memory_space<vmem>>, %arg3: memref<2x8x1024xf32, #tpu.memory_space<vmem>>, %arg4: memref<1x1xf32, #tpu.memory_space<smem>>, %arg5: memref<8x1024xf32, #tpu.memory_space<vmem>>) attributes {dimension_semantics = [#tpu.dimension_semantics<parallel>, #tpu.dimension_semantics<arbitrary>], iteration_bounds = array<i64: 1, 1>, scalar_prefetch = 0 : i64, scratch_operands = 1 : i64, tpu.core_type = #tpu.core_type<tc>, window_params = [{transform_indices = @transform_0, window_bounds = array<i64: 2, 8, 1024>}, {transform_indices = @transform_1, window_bounds = array<i64: 2, 8, 1024>}, {transform_indices = @transform_2, window_bounds = array<i64: 1, 1>}]} {
    %c0_i32 = arith.constant 0 : i32
    %0 = arith.cmpi eq, %arg1, %c0_i32 : i32
    %1 = arith.extui %0 : i1 to i32
    %c0_i32_0 = arith.constant 0 : i32
    %2 = arith.cmpi ne, %1, %c0_i32_0 : i32
    scf.if %2 {
      %cst_22 = arith.constant 0.000000e+00 : f32
      %48 = vector.broadcast %cst_22 : f32 to vector<8x1024xf32>
      %c0_23 = arith.constant 0 : index
      %c0_24 = arith.constant 0 : index
      %49 = vector.load %arg5[%c0_23, %c0_24] : memref<8x1024xf32, #tpu.memory_space<vmem>>, vector<8x1024xf32>
      tpu.vector_store %arg5[%c0_23, %c0_24], %48 {strides = array<i32>} : memref<8x1024xf32, #tpu.memory_space<vmem>>, vector<8x1024xf32>,
    } else {
    }
    %c0 = arith.constant 0 : index
    %c0_1 = arith.constant 0 : index
    %c0_2 = arith.constant 0 : index
    %3 = vector.load %arg2[%c0, %c0_1, %c0_2] : memref<2x8x1024xf32, #tpu.memory_space<vmem>>, vector<1x8x1024xf32>
    %4 = vector.shape_cast %3 : vector<1x8x1024xf32> to vector<8x1024xf32>
    %c1 = arith.constant 1 : index
    %c0_3 = arith.constant 0 : index
    %c0_4 = arith.constant 0 : index
    %5 = vector.load %arg2[%c1, %c0_3, %c0_4] : memref<2x8x1024xf32, #tpu.memory_space<vmem>>, vector<1x8x1024xf32>
    %6 = vector.shape_cast %5 : vector<1x8x1024xf32> to vector<8x1024xf32>
    %c0_5 = arith.constant 0 : index
    %c0_6 = arith.constant 0 : index
    %c0_7 = arith.constant 0 : index
    %7 = vector.load %arg3[%c0_5, %c0_6, %c0_7] : memref<2x8x1024xf32, #tpu.memory_space<vmem>>, vector<1x8x1024xf32>
    %8 = vector.shape_cast %7 : vector<1x8x1024xf32> to vector<8x1024xf32>
    %c1_8 = arith.constant 1 : index
    %c0_9 = arith.constant 0 : index
    %c0_10 = arith.constant 0 : index
    %9 = vector.load %arg3[%c1_8, %c0_9, %c0_10] : memref<2x8x1024xf32, #tpu.memory_space<vmem>>, vector<1x8x1024xf32>
    %10 = vector.shape_cast %9 : vector<1x8x1024xf32> to vector<8x1024xf32>
    %11 = arith.mulf %4, %8 : vector<8x1024xf32>
    %12 = arith.mulf %6, %10 : vector<8x1024xf32>
    %13 = arith.addf %11, %12 : vector<8x1024xf32>
    %14 = arith.mulf %4, %4 : vector<8x1024xf32>
    %15 = arith.mulf %6, %6 : vector<8x1024xf32>
    %16 = arith.addf %14, %15 : vector<8x1024xf32>
    %17 = arith.mulf %8, %8 : vector<8x1024xf32>
    %18 = arith.mulf %10, %10 : vector<8x1024xf32>
    %19 = arith.addf %17, %18 : vector<8x1024xf32>
    %cst = arith.constant 1.000000e-16 : f32
    %20 = vector.broadcast %cst : f32 to vector<8x1024xf32>
    %21 = arith.maximumf %16, %20 : vector<8x1024xf32>
    %22 = math.rsqrt %21 : vector<8x1024xf32>
    %23 = arith.mulf %13, %22 : vector<8x1024xf32>
    %cst_11 = arith.constant 1.000000e-16 : f32
    %24 = vector.broadcast %cst_11 : f32 to vector<8x1024xf32>
    %25 = arith.maximumf %19, %24 : vector<8x1024xf32>
    %26 = math.rsqrt %25 : vector<8x1024xf32>
    %27 = arith.mulf %23, %26 : vector<8x1024xf32>
    %cst_12 = arith.constant 1.000000e+00 : f32
    %28 = vector.broadcast %cst_12 : f32 to vector<8x1024xf32>
    %29 = arith.subf %28, %27 : vector<8x1024xf32>
    %c1_i32 = arith.constant 1 : i32
    %30 = arith.muli %arg0, %c1_i32 : i32
    %31 = arith.addi %30, %arg1 : i32
    %c8_i32 = arith.constant 8 : i32
    %32 = arith.muli %31, %c8_i32 : i32
    %33 = tpu.iota {dimensions = array<i32: 0>} : vector<8x1024xi32>
    %34 = vector.broadcast %32 : i32 to vector<8x1024xi32>
    %35 = arith.addi %34, %33 : vector<8x1024xi32>
    %c1_i32_13 = arith.constant 1 : i32
    %36 = vector.broadcast %c1_i32_13 : i32 to vector<8x1024xi32>
    %37 = arith.cmpi slt, %35, %36 : vector<8x1024xi32>
    %cst_14 = arith.constant 0.000000e+00 : f32
    %38 = vector.broadcast %cst_14 : f32 to vector<8x1024xf32>
    %39 = arith.select %37, %29, %38 : vector<8x1024xi1>, vector<8x1024xf32>
    %c0_15 = arith.constant 0 : index
    %c0_16 = arith.constant 0 : index
    %40 = vector.load %arg5[%c0_15, %c0_16] : memref<8x1024xf32, #tpu.memory_space<vmem>>, vector<8x1024xf32>
    %41 = vector.shape_cast %39 : vector<8x1024xf32> to vector<1x8x1024xf32>
    %cst_17 = arith.constant dense<0.000000e+00> : vector<8x1024xf32>
    %42 = vector.multi_reduction <add>, %41, %cst_17 [0] : vector<1x8x1024xf32> to vector<8x1024xf32>
    %43 = arith.addf %40, %42 : vector<8x1024xf32>
    %c0_18 = arith.constant 0 : index
    %c0_19 = arith.constant 0 : index
    %44 = vector.load %arg5[%c0_18, %c0_19] : memref<8x1024xf32, #tpu.memory_space<vmem>>, vector<8x1024xf32>
    tpu.vector_store %arg5[%c0_18, %c0_19], %43 {strides = array<i32>} : memref<8x1024xf32, #tpu.memory_space<vmem>>, vector<8x1024xf32>,
    %c0_i32_20 = arith.constant 0 : i32
    %45 = arith.cmpi eq, %arg1, %c0_i32_20 : i32
    %46 = arith.extui %45 : i1 to i32
    %c0_i32_21 = arith.constant 0 : i32
    %47 = arith.cmpi ne, %46, %c0_i32_21 : i32
    scf.if %47 {
      %c0_22 = arith.constant 0 : index
      %c0_23 = arith.constant 0 : index
      %48 = vector.load %arg5[%c0_22, %c0_23] : memref<8x1024xf32, #tpu.memory_space<vmem>>, vector<8x1024xf32>
      %49 = vector.shape_cast %48 : vector<8x1024xf32> to vector<1x8x1024xf32>
      %cst_24 = arith.constant dense<0.000000e+00> : vector<1xf32>
      %50 = vector.multi_reduction <add>, %49, %cst_24 [1, 2] : vector<1x8x1024xf32> to vector<1xf32>
      %51 = vector.shape_cast %50 : vector<1xf32> to vector<1x1x1xf32>
      %52 = vector.extract %51[0, 0, 0] : f32 from vector<1x1x1xf32>
      %cst_25 = arith.constant 3.125000e-02 : f32
      %53 = arith.mulf %52, %cst_25 : f32
      %c0_26 = arith.constant 0 : index
      %c0_27 = arith.constant 0 : index
      %54 = memref.load %arg4[%c0_26, %c0_27] : memref<1x1xf32, #tpu.memory_space<smem>>
      memref.store %53, %arg4[%c0_26, %c0_27] : memref<1x1xf32, #tpu.memory_space<smem>>
    } else {
    }
    return
  }
  func.func @transform_0(%arg0: i32, %arg1: i32) -> (i32, i32, i32) {
    %c1_i32 = arith.constant 1 : i32
    %0 = arith.muli %arg0, %c1_i32 : i32
    %1 = arith.addi %0, %arg1 : i32
    %c0_i32 = arith.constant 0 : i32
    %2 = arith.minsi %1, %c0_i32 : i32
    %c0_i32_0 = arith.constant 0 : i32
    %c0_i32_1 = arith.constant 0 : i32
    %c0_i32_2 = arith.constant 0 : i32
    return %c0_i32_0, %2, %c0_i32_1 : i32, i32, i32
  }
  func.func @transform_1(%arg0: i32, %arg1: i32) -> (i32, i32, i32) {
    %c1_i32 = arith.constant 1 : i32
    %0 = arith.muli %arg0, %c1_i32 : i32
    %1 = arith.addi %0, %arg1 : i32
    %c0_i32 = arith.constant 0 : i32
    %2 = arith.minsi %1, %c0_i32 : i32
    %c0_i32_0 = arith.constant 0 : i32
    %c0_i32_1 = arith.constant 0 : i32
    %c0_i32_2 = arith.constant 0 : i32
    return %c0_i32_0, %2, %c0_i32_1 : i32, i32, i32
  }
  func.func @transform_2(%arg0: i32, %arg1: i32) -> (i32, i32) {
    %c0_i32 = arith.constant 0 : i32
    %c0_i32_0 = arith.constant 0 : i32
    return %arg0, %c0_i32 : i32, i32
  }
}

</mosaic_0001>

<llo_original>
// kernel: tpu_custom_call.1
$region0: #{tpu_custom_call.1}
  #allocation0 [shape = 'u32[]', space=smem, size = 0x4, offset = 0x4, fixed_abs, tag = 'smem constant byte address 0x4 - core index']
  #allocation1 [shape = 'u32[144,128]{1,0:T(1,128)}', space=vmem, size = 0x12000, scoped, tag = 'internal scratch']
  #allocation2 [shape = 'f32[8,1024]{1,0:T(8,128)}', space=vmem, size = 0x8000, scoped, tag = 'scratch operand']
  #allocation9 [shape = 's32[]', space=sflag, size = 0x4, offset = 0, fixed_abs, tag = 'sflag constant byte address 0x0 - dummy sync flag']
  #allocation11 [shape = 's32[]', space=sflag, size = 0x4, offset = 0, fixed_abs, tag = 'sflag constant byte address 0x0 - dummy sync flag']
  %s0 = inlined_call_operand.hbm [shape: f32[2,1,1024], index: 0, kind: input, shape index: {}]
  %s1 = inlined_call_operand.hbm [shape: f32[2,1,1024], index: 1, kind: input, shape index: {}]
  %s2 = inlined_call_operand.hbm [shape: f32[1,1], index: 2, kind: output, shape index: {}]
  %s3 = sld [smem:[#allocation0]]
  $region34: #{tpu_custom_call.1} parent=0
    _
  %s5 = ssub.s32 1, %s3
  %s6 = scalar_select 0, %s5, %s3
  $region1: #{tpu_custom_call.1} parent=0
    #allocation3 [shape = 'u8[65536]{0}', space=vmem, size = 0x10000, scoped, tag = 'input window, operand 0, single buffered']
    #allocation4 [shape = 's32[1]{0}', space=sflag, size = 0x4, scoped, tag = 'scoped memory for tpu_custom_call.1']
    #allocation5 [shape = 's32[1]{0}', space=sflag, size = 0x4, scoped, tag = 'scoped memory for tpu_custom_call.1']
    #allocation6 [shape = 'u8[65536]{0}', space=vmem, size = 0x10000, scoped, tag = 'input window, operand 1, single buffered']
    #allocation7 [shape = 's32[1]{0}', space=sflag, size = 0x4, scoped, tag = 'scoped memory for tpu_custom_call.1']
    #allocation8 [shape = 'u8[512]{0}', space=smem, size = 0x200, scoped, tag = 'output window, operand 0, single buffered']
    %7 = vsyncpa [#allocation4], 0
    %8 = vsyncpa [#allocation7], 0
    %9 = vsyncpa [#allocation5], 0
    // Predicated region
    $region2: #{tpu_custom_call.1} parent=1 // pred_check
      _
    $region3: #{tpu_custom_call.1} parent=1 // pred_check_branch
      %11 = sbr.rel (0) target = $region5
    $region4: #{tpu_custom_call.1} parent=1 // pred_region
      #allocation10 [shape = 'u32[6]{0}', space=smem, size = 0x18, scoped, tag = 'DMA stride descriptor']
      %s12 = sadd.s32 0, 0
      %p13 = scmp.lt.s32.totalorder %s12, 0
      %s14 = scalar_select %p13, %s12, 0
      %s15 = smul.u32 8, %s14
      %s16 = ssub.s32 1, %s15
      %s17 = smul.u32 32, %s16
      %s18 = smul.u32 %s17, 8
      %s20 = ssub.s32 2048, %s18
      %21 = vsyncadd [#allocation4], %s20
      %p22 = scmp.ne.s32.totalorder 0, %s18
      %s23 = smul.addr %s15, 8
      %s24 = smul.addr %s23, 16
      %s25 = scalar_lea.hbm %s0, %s24
      %s26 = smul.u32 8, %s16
      %s27 = smul.u32 %s26, 2
      %s29 = sshll.u32 1, 14
      %s30 = sxor.u32 4294967295, %s29
      %s32 = sld [smem:[#allocation0]]
      %s33 = sadd.s32 2, %s32
      %s35 = sshll.u32 7, 26
      %s36 = sxor.u32 4294967295, %s35
      %s37 = sand.u32 0, %s36
      %s38 = sshll.u32 %s33, 26
      %s39 = sor.u32 %s37, %s38
      %s40 = sshll.u32 [#allocation3], 4
      %s41 = int_to_ptr.vmem [resolvable:$true] %s40
      %s42 = sshll.u32 %s27, 4
      %47 = sst [smem:[#allocation10]] 128
      %s48 = scalar_lea.smem [#allocation10], 1
      %49 = sst [smem:[%s48]] 1024
      %s50 = scalar_lea.smem [#allocation10], 2
      %51 = sst [smem:[%s50]] %s16
      %s52 = scalar_lea.smem [#allocation10], 3
      %53 = sst [smem:[%s52]] 128
      %s54 = scalar_lea.smem [#allocation10], 4
      %55 = sst [smem:[%s54]] 128
      %s56 = scalar_lea.smem [#allocation10], 5
      %57 = sst [smem:[%s56]] 8
      %59 = dma.general (%p22), %s25, %s42, %s41, [#allocation4], [#allocation9], [#allocation10], %s39, 0
    $region5: #{tpu_custom_call.1} parent=1 // pred_fallthru
      _
    // Predicated region
    $region6: #{tpu_custom_call.1} parent=1 // pred_check
      _
    $region7: #{tpu_custom_call.1} parent=1 // pred_check_branch
      %61 = sbr.rel (0) target = $region9
    $region8: #{tpu_custom_call.1} parent=1 // pred_region
      #allocation12 [shape = 'u32[6]{0}', space=smem, size = 0x18, scoped, tag = 'DMA stride descriptor']
      %s62 = sadd.s32 0, 0
      %p63 = scmp.lt.s32.totalorder %s62, 0
      %s64 = scalar_select %p63, %s62, 0
      %s65 = smul.u32 8, %s64
      %s66 = ssub.s32 1, %s65
      %s67 = smul.u32 32, %s66
      %s68 = smul.u32 %s67, 8
      %s70 = ssub.s32 2048, %s68
      %71 = vsyncadd [#allocation7], %s70
      %p72 = scmp.ne.s32.totalorder 0, %s68
      %s73 = smul.addr %s65, 8
      %s74 = smul.addr %s73, 16
      %s75 = scalar_lea.hbm %s1, %s74
      %s76 = smul.u32 8, %s66
      %s77 = smul.u32 %s76, 2
      %s79 = sshll.u32 1, 14
      %s80 = sxor.u32 4294967295, %s79
      %s82 = sld [smem:[#allocation0]]
      %s83 = sadd.s32 2, %s82
      %s85 = sshll.u32 7, 26
      %s86 = sxor.u32 4294967295, %s85
      %s87 = sand.u32 0, %s86
      %s88 = sshll.u32 %s83, 26
      %s89 = sor.u32 %s87, %s88
      %s90 = sshll.u32 [#allocation6], 4
      %s91 = int_to_ptr.vmem [resolvable:$true] %s90
      %s92 = sshll.u32 %s77, 4
      %97 = sst [smem:[#allocation12]] 128
      %s98 = scalar_lea.smem [#allocation12], 1
      %99 = sst [smem:[%s98]] 1024
      %s100 = scalar_lea.smem [#allocation12], 2
      %101 = sst [smem:[%s100]] %s66
      %s102 = scalar_lea.smem [#allocation12], 3
      %103 = sst [smem:[%s102]] 128
      %s104 = scalar_lea.smem [#allocation12], 4
      %105 = sst [smem:[%s104]] 128
      %s106 = scalar_lea.smem [#allocation12], 5
      %107 = sst [smem:[%s106]] 8
      %109 = dma.general (%p72), %s75, %s92, %s91, [#allocation7], [#allocation11], [#allocation12], %s89, 0
    $region9: #{tpu_custom_call.1} parent=1 // pred_fallthru
      _
    // Predicated region
    $region10: #{tpu_custom_call.1} parent=1 // pred_check
      _
    $region11: #{tpu_custom_call.1} parent=1 // pred_check_branch
      %111 = sbr.rel (0) target = $region13
    $region12: #{tpu_custom_call.1} parent=1 // pred_region
      %112 = dma.done [#allocation4], 2048
    $region13: #{tpu_custom_call.1} parent=1 // pred_fallthru
      _
    // Predicated region
    $region14: #{tpu_custom_call.1} parent=1 // pred_check
      _
    $region15: #{tpu_custom_call.1} parent=1 // pred_check_branch
      %114 = sbr.rel (0) target = $region17
    $region16: #{tpu_custom_call.1} parent=1 // pred_region
      %115 = dma.done [#allocation7], 2048
    $region17: #{tpu_custom_call.1} parent=1 // pred_fallthru
      _
    %s116 = sadd.s32 0, 0
    %p117 = scmp.lt.s32.totalorder %s116, 0
    %s118 = scalar_select %p117, %s116, 0
    %s119 = smul.u32 8, %s118
    %s120 = ssub.s32 1, %s119
    %s121 = smul.u32 32, %s120
    %s122 = smul.u32 %s121, 8
    %s123 = sadd.s32 0, 0
    %p124 = scmp.lt.s32.totalorder %s123, 0
    %s125 = scalar_select %p124, %s123, 0
    %s126 = smul.u32 8, %s125
    %s127 = ssub.s32 1, %s126
    %s128 = smul.u32 32, %s127
    %s129 = smul.u32 %s128, 8
    %p130 = scmp.eq.s32.totalorder 0, 0
    // Predicated region
    $region18: #{tpu_custom_call.1} parent=1 // pred_check
      %p131 = pneg %p130
    $region19: #{tpu_custom_call.1} parent=1 // pred_check_branch
      %133 = sbr.rel (%p131) target = $region21
    $region20: #{tpu_custom_call.1} parent=1 // pred_region
      %134 = vst [vmem:[#allocation2] sm:$0xff] 0.0
      %135 = vst [vmem:[#allocation2 + $0x8] sm:$0xff] 0.0
      %136 = vst [vmem:[#allocation2 + $0x10] sm:$0xff] 0.0
      %137 = vst [vmem:[#allocation2 + $0x18] sm:$0xff] 0.0
      %138 = vst [vmem:[#allocation2 + $0x20] sm:$0xff] 0.0
      %139 = vst [vmem:[#allocation2 + $0x28] sm:$0xff] 0.0
      %140 = vst [vmem:[#allocation2 + $0x30] sm:$0xff] 0.0
      %141 = vst [vmem:[#allocation2 + $0x38] sm:$0xff] 0.0
    $region21: #{tpu_custom_call.1} parent=1 // pred_fallthru
      _
    %v142 = vld [vmem:[#allocation3] sm:$0xff]
    %v143 = vld [vmem:[#allocation3 + $0x8] sm:$0xff]
    %v144 = vld [vmem:[#allocation3 + $0x10] sm:$0xff]
    %v145 = vld [vmem:[#allocation3 + $0x18] sm:$0xff]
    %v146 = vld [vmem:[#allocation3 + $0x20] sm:$0xff]
    %v147 = vld [vmem:[#allocation3 + $0x28] sm:$0xff]
    %v148 = vld [vmem:[#allocation3 + $0x30] sm:$0xff]
    %v149 = vld [vmem:[#allocation3 + $0x38] sm:$0xff]
    %s150 = scalar_lea.vmem [#allocation3], 64
    %v151 = vld [vmem:[%s150] sm:$0xff]
    %v152 = vld [vmem:[%s150 + $0x8] sm:$0xff]
    %v153 = vld [vmem:[%s150 + $0x10] sm:$0xff]
    %v154 = vld [vmem:[%s150 + $0x18] sm:$0xff]
    %v155 = vld [vmem:[%s150 + $0x20] sm:$0xff]
    %v156 = vld [vmem:[%s150 + $0x28] sm:$0xff]
    %v157 = vld [vmem:[%s150 + $0x30] sm:$0xff]
    %v158 = vld [vmem:[%s150 + $0x38] sm:$0xff]
    %v159 = vld [vmem:[#allocation6] sm:$0xff]
    %v160 = vld [vmem:[#allocation6 + $0x8] sm:$0xff]
    %v161 = vld [vmem:[#allocation6 + $0x10] sm:$0xff]
    %v162 = vld [vmem:[#allocation6 + $0x18] sm:$0xff]
    %v163 = vld [vmem:[#allocation6 + $0x20] sm:$0xff]
    %v164 = vld [vmem:[#allocation6 + $0x28] sm:$0xff]
    %v165 = vld [vmem:[#allocation6 + $0x30] sm:$0xff]
    %v166 = vld [vmem:[#allocation6 + $0x38] sm:$0xff]
    %s167 = scalar_lea.vmem [#allocation6], 64
    %v168 = vld [vmem:[%s167] sm:$0xff]
    %v169 = vld [vmem:[%s167 + $0x8] sm:$0xff]
    %v170 = vld [vmem:[%s167 + $0x10] sm:$0xff]
    %v171 = vld [vmem:[%s167 + $0x18] sm:$0xff]
    %v172 = vld [vmem:[%s167 + $0x20] sm:$0xff]
    %v173 = vld [vmem:[%s167 + $0x28] sm:$0xff]
    %v174 = vld [vmem:[%s167 + $0x30] sm:$0xff]
    %v175 = vld [vmem:[%s167 + $0x38] sm:$0xff]
    %v176 = vmul.f32 %v142, %v159
    %v177 = vmul.f32 %v143, %v160
    %v178 = vmul.f32 %v144, %v161
    %v179 = vmul.f32 %v145, %v162
    %v180 = vmul.f32 %v146, %v163
    %v181 = vmul.f32 %v147, %v164
    %v182 = vmul.f32 %v148, %v165
    %v183 = vmul.f32 %v149, %v166
    %v184 = vmul.f32 %v151, %v168
    %v185 = vmul.f32 %v152, %v169
    %v186 = vmul.f32 %v153, %v170
    %v187 = vmul.f32 %v154, %v171
    %v188 = vmul.f32 %v155, %v172
    %v189 = vmul.f32 %v156, %v173
    %v190 = vmul.f32 %v157, %v174
    %v191 = vmul.f32 %v158, %v175
    %v192 = vadd.f32 %v176, %v184
    %v193 = vadd.f32 %v177, %v185
    %v194 = vadd.f32 %v178, %v186
    %v195 = vadd.f32 %v179, %v187
    %v196 = vadd.f32 %v180, %v188
    %v197 = vadd.f32 %v181, %v189
    %v198 = vadd.f32 %v182, %v190
    %v199 = vadd.f32 %v183, %v191
    %v200 = vmul.f32 %v142, %v142
    %v201 = vmul.f32 %v143, %v143
    %v202 = vmul.f32 %v144, %v144
    %v203 = vmul.f32 %v145, %v145
    %v204 = vmul.f32 %v146, %v146
    %v205 = vmul.f32 %v147, %v147
    %v206 = vmul.f32 %v148, %v148
    %v207 = vmul.f32 %v149, %v149
    %v208 = vmul.f32 %v151, %v151
    %v209 = vmul.f32 %v152, %v152
    %v210 = vmul.f32 %v153, %v153
    %v211 = vmul.f32 %v154, %v154
    %v212 = vmul.f32 %v155, %v155
    %v213 = vmul.f32 %v156, %v156
    %v214 = vmul.f32 %v157, %v157
    %v215 = vmul.f32 %v158, %v158
    %v216 = vadd.f32 %v200, %v208
    %v217 = vadd.f32 %v201, %v209
    %v218 = vadd.f32 %v202, %v210
    %v219 = vadd.f32 %v203, %v211
    %v220 = vadd.f32 %v204, %v212
    %v221 = vadd.f32 %v205, %v213
    %v222 = vadd.f32 %v206, %v214
    %v223 = vadd.f32 %v207, %v215
    %v224 = vmul.f32 %v159, %v159
    %v225 = vmul.f32 %v160, %v160
    %v226 = vmul.f32 %v161, %v161
    %v227 = vmul.f32 %v162, %v162
    %v228 = vmul.f32 %v163, %v163
    %v229 = vmul.f32 %v164, %v164
    %v230 = vmul.f32 %v165, %v165
    %v231 = vmul.f32 %v166, %v166
    %v232 = vmul.f32 %v168, %v168
    %v233 = vmul.f32 %v169, %v169
    %v234 = vmul.f32 %v170, %v170
    %v235 = vmul.f32 %v171, %v171
    %v236 = vmul.f32 %v172, %v172
    %v237 = vmul.f32 %v173, %v173
    %v238 = vmul.f32 %v174, %v174
    %v239 = vmul.f32 %v175, %v175
    %v240 = vadd.f32 %v224, %v232
    %v241 = vadd.f32 %v225, %v233
    %v242 = vadd.f32 %v226, %v234
    %v243 = vadd.f32 %v227, %v235
    %v244 = vadd.f32 %v228, %v236
    %v245 = vadd.f32 %v229, %v237
    %v246 = vadd.f32 %v230, %v238
    %v247 = vadd.f32 %v231, %v239
    %v248 = vmax.f32 %v216, 1e-16
    %v249 = vmax.f32 %v217, 1e-16
    %v250 = vmax.f32 %v218, 1e-16
    %v251 = vmax.f32 %v219, 1e-16
    %v252 = vmax.f32 %v220, 1e-16
    %v253 = vmax.f32 %v221, 1e-16
    %v254 = vmax.f32 %v222, 1e-16
    %v255 = vmax.f32 %v223, 1e-16
    %v256 = vrsqrt.pop %v248
    %v257 = vrsqrt.pop %v249
    %v258 = vrsqrt.pop %v250
    %v259 = vrsqrt.pop %v251
    %v260 = vrsqrt.pop %v252
    %v261 = vrsqrt.pop %v253
    %v262 = vrsqrt.pop %v254
    %v263 = vrsqrt.pop %v255
    %v264 = vmul.f32 %v192, %v256
    %v265 = vmul.f32 %v193, %v257
    %v266 = vmul.f32 %v194, %v258
    %v267 = vmul.f32 %v195, %v259
    %v268 = vmul.f32 %v196, %v260
    %v269 = vmul.f32 %v197, %v261
    %v270 = vmul.f32 %v198, %v262
    %v271 = vmul.f32 %v199, %v263
    %v272 = vmax.f32 %v240, 1e-16
    %v273 = vmax.f32 %v241, 1e-16
    %v274 = vmax.f32 %v242, 1e-16
    %v275 = vmax.f32 %v243, 1e-16
    %v276 = vmax.f32 %v244, 1e-16
    %v277 = vmax.f32 %v245, 1e-16
    %v278 = vmax.f32 %v246, 1e-16
    %v279 = vmax.f32 %v247, 1e-16
    %v280 = vrsqrt.pop %v272
    %v281 = vrsqrt.pop %v273
    %v282 = vrsqrt.pop %v274
    %v283 = vrsqrt.pop %v275
    %v284 = vrsqrt.pop %v276
    %v285 = vrsqrt.pop %v277
    %v286 = vrsqrt.pop %v278
    %v287 = vrsqrt.pop %v279
    %v288 = vmul.f32 %v264, %v280
    %v289 = vmul.f32 %v265, %v281
    %v290 = vmul.f32 %v266, %v282
    %v291 = vmul.f32 %v267, %v283
    %v292 = vmul.f32 %v268, %v284
    %v293 = vmul.f32 %v269, %v285
    %v294 = vmul.f32 %v270, %v286
    %v295 = vmul.f32 %v271, %v287
    %v296 = vsub.f32 1.0, %v288
    %v297 = vsub.f32 1.0, %v289
    %v298 = vsub.f32 1.0, %v290
    %v299 = vsub.f32 1.0, %v291
    %v300 = vsub.f32 1.0, %v292
    %v301 = vsub.f32 1.0, %v293
    %v302 = vsub.f32 1.0, %v294
    %v303 = vsub.f32 1.0, %v295
    %s304 = sadd.s32 0, 0
    %s305 = smul.u32 %s304, 8
    %v306 = vlaneseq
    %v307 = vshrl.u32 %v306, 7
    %v308 = vstv %s305
    %v309 = vadd.s32 %v308, %v307
    %vm310 = vcmp.lt.s32.totalorder %v309, 1
    %v319 = vcombine.low %v296, %v297
    %v320 = vcombine.high %v296, %v297
    %v321 = vcombine.low %v298, %v299
    %v322 = vcombine.high %v298, %v299
    %v323 = vcombine.low %v300, %v301
    %v324 = vcombine.high %v300, %v301
    %v325 = vcombine.low %v302, %v303
    %v326 = vcombine.high %v302, %v303
    %v328 = vunpack.c.l.s4 1966171168
    %v329 = vunpack.c.0.s8 %v328
    %v330 = vlaneseq
    %v331 = vshrl.u32 %v330, 7
    %v332 = vsub.s32 %v329, %v331
    %v333 = vrot.slane %v319, %v332
    %v335 = vunpack.c.l.s4 1966171168
    %v336 = vunpack.c.0.s8 %v335
    %v337 = vlaneseq
    %v338 = vshrl.u32 %v337, 7
    %v339 = vsub.s32 %v336, %v338
    %v340 = vrot.slane %v320, %v339
    %v342 = vunpack.c.l.s4 1966171168
    %v343 = vunpack.c.0.s8 %v342
    %v344 = vlaneseq
    %v345 = vshrl.u32 %v344, 7
    %v346 = vsub.s32 %v343, %v345
    %v347 = vrot.slane %v321, %v346
    %v349 = vunpack.c.l.s4 1966171168
    %v350 = vunpack.c.0.s8 %v349
    %v351 = vlaneseq
    %v352 = vshrl.u32 %v351, 7
    %v353 = vsub.s32 %v350, %v352
    %v354 = vrot.slane %v322, %v353
    %v356 = vunpack.c.l.s4 1966171168
    %v357 = vunpack.c.0.s8 %v356
    %v358 = vlaneseq
    %v359 = vshrl.u32 %v358, 7
    %v360 = vsub.s32 %v357, %v359
    %v361 = vrot.slane %v323, %v360
    %v363 = vunpack.c.l.s4 1966171168
    %v364 = vunpack.c.0.s8 %v363
    %v365 = vlaneseq
    %v366 = vshrl.u32 %v365, 7
    %v367 = vsub.s32 %v364, %v366
    %v368 = vrot.slane %v324, %v367
    %v370 = vunpack.c.l.s4 1966171168
    %v371 = vunpack.c.0.s8 %v370
    %v372 = vlaneseq
    %v373 = vshrl.u32 %v372, 7
    %v374 = vsub.s32 %v371, %v373
    %v375 = vrot.slane %v325, %v374
    %v377 = vunpack.c.l.s4 1966171168
    %v378 = vunpack.c.0.s8 %v377
    %v379 = vlaneseq
    %v380 = vshrl.u32 %v379, 7
    %v381 = vsub.s32 %v378, %v380
    %v382 = vrot.slane %v326, %v381
    %v383 = vcombine.low %v333, %v347
    %v384 = vcombine.high %v333, %v347
    %v385 = vcombine.low %v340, %v354
    %v386 = vcombine.high %v340, %v354
    %v387 = vcombine.low %v361, %v375
    %v388 = vcombine.high %v361, %v375
    %v389 = vcombine.low %v368, %v382
    %v390 = vcombine.high %v368, %v382
    %v392 = vunpack.c.l.s4 1966171168
    %v393 = vunpack.c.0.s8 %v392
    %v394 = vlaneseq
    %v395 = vshrl.u32 %v394, 7
    %v396 = vsub.s32 %v393, %v395
    %v397 = vrot.slane %v383, %v396
    %v399 = vunpack.c.l.s4 1966171168
    %v400 = vunpack.c.0.s8 %v399
    %v401 = vlaneseq
    %v402 = vshrl.u32 %v401, 7
    %v403 = vsub.s32 %v400, %v402
    %v404 = vrot.slane %v385, %v403
    %v406 = vunpack.c.l.s4 1966171168
    %v407 = vunpack.c.0.s8 %v406
    %v408 = vlaneseq
    %v409 = vshrl.u32 %v408, 7
    %v410 = vsub.s32 %v407, %v409
    %v411 = vrot.slane %v384, %v410
    %v413 = vunpack.c.l.s4 1966171168
    %v414 = vunpack.c.0.s8 %v413
    %v415 = vlaneseq
    %v416 = vshrl.u32 %v415, 7
    %v417 = vsub.s32 %v414, %v416
    %v418 = vrot.slane %v386, %v417
    %v420 = vunpack.c.l.s4 1966171168
    %v421 = vunpack.c.0.s8 %v420
    %v422 = vlaneseq
    %v423 = vshrl.u32 %v422, 7
    %v424 = vsub.s32 %v421, %v423
    %v425 = vrot.slane %v387, %v424
    %v427 = vunpack.c.l.s4 1966171168
    %v428 = vunpack.c.0.s8 %v427
    %v429 = vlaneseq
    %v430 = vshrl.u32 %v429, 7
    %v431 = vsub.s32 %v428, %v430
    %v432 = vrot.slane %v389, %v431
    %v434 = vunpack.c.l.s4 1966171168
    %v435 = vunpack.c.0.s8 %v434
    %v436 = vlaneseq
    %v437 = vshrl.u32 %v436, 7
    %v438 = vsub.s32 %v435, %v437
    %v439 = vrot.slane %v388, %v438
    %v441 = vunpack.c.l.s4 1966171168
    %v442 = vunpack.c.0.s8 %v441
    %v443 = vlaneseq
    %v444 = vshrl.u32 %v443, 7
    %v445 = vsub.s32 %v442, %v444
    %v446 = vrot.slane %v390, %v445
    %v447 = vcombine.low %v397, %v425
    %v448 = vcombine.high %v397, %v425
    %v449 = vcombine.low %v404, %v432
    %v450 = vcombine.high %v404, %v432
    %v451 = vcombine.low %v411, %v439
    %v452 = vcombine.high %v411, %v439
    %v453 = vcombine.low %v418, %v446
    %v454 = vcombine.high %v418, %v446
    %v463 = vsel %vm310, %v447, 0.0
    %v464 = vsel %vm310, %v451, 0.0
    %v465 = vsel %vm310, %v448, 0.0
    %v466 = vsel %vm310, %v452, 0.0
    %v467 = vsel %vm310, %v449, 0.0
    %v468 = vsel %vm310, %v453, 0.0
    %v469 = vsel %vm310, %v450, 0.0
    %v470 = vsel %vm310, %v454, 0.0
    %v471 = vld [vmem:[#allocation2] sm:$0xff]
    %v472 = vld [vmem:[#allocation2 + $0x8] sm:$0xff]
    %v473 = vld [vmem:[#allocation2 + $0x10] sm:$0xff]
    %v474 = vld [vmem:[#allocation2 + $0x18] sm:$0xff]
    %v475 = vld [vmem:[#allocation2 + $0x20] sm:$0xff]
    %v476 = vld [vmem:[#allocation2 + $0x28] sm:$0xff]
    %v477 = vld [vmem:[#allocation2 + $0x30] sm:$0xff]
    %v478 = vld [vmem:[#allocation2 + $0x38] sm:$0xff]
    %v479 = vadd.f32 %v463, 0.0
    %v480 = vadd.f32 %v464, 0.0
    %v481 = vadd.f32 %v465, 0.0
    %v482 = vadd.f32 %v466, 0.0
    %v483 = vadd.f32 %v467, 0.0
    %v484 = vadd.f32 %v468, 0.0
    %v485 = vadd.f32 %v469, 0.0
    %v486 = vadd.f32 %v470, 0.0
    %v487 = vadd.f32 %v471, %v479
    %v488 = vadd.f32 %v472, %v480
    %v489 = vadd.f32 %v473, %v481
    %v490 = vadd.f32 %v474, %v482
    %v491 = vadd.f32 %v475, %v483
    %v492 = vadd.f32 %v476, %v484
    %v493 = vadd.f32 %v477, %v485
    %v494 = vadd.f32 %v478, %v486
    %495 = vst [vmem:[#allocation2] sm:$0xff] %v487
    %496 = vst [vmem:[#allocation2 + $0x8] sm:$0xff] %v488
    %497 = vst [vmem:[#allocation2 + $0x10] sm:$0xff] %v489
    %498 = vst [vmem:[#allocation2 + $0x18] sm:$0xff] %v490
    %499 = vst [vmem:[#allocation2 + $0x20] sm:$0xff] %v491
    %500 = vst [vmem:[#allocation2 + $0x28] sm:$0xff] %v492
    %501 = vst [vmem:[#allocation2 + $0x30] sm:$0xff] %v493
    %502 = vst [vmem:[#allocation2 + $0x38] sm:$0xff] %v494
    // Predicated region
    $region22: #{tpu_custom_call.1} parent=1 // pred_check
      %p503 = pneg %p130
    $region23: #{tpu_custom_call.1} parent=1 // pred_check_branch
      %505 = sbr.rel (%p503) target = $region25
    $region24: #{tpu_custom_call.1} parent=1 // pred_region
      %v506 = vld [vmem:[#allocation2] sm:$0xff]
      %v507 = vld [vmem:[#allocation2 + $0x8] sm:$0xff]
      %v508 = vld [vmem:[#allocation2 + $0x10] sm:$0xff]
      %v509 = vld [vmem:[#allocation2 + $0x18] sm:$0xff]
      %v510 = vld [vmem:[#allocation2 + $0x20] sm:$0xff]
      %v511 = vld [vmem:[#allocation2 + $0x28] sm:$0xff]
      %v512 = vld [vmem:[#allocation2 + $0x30] sm:$0xff]
      %v513 = vld [vmem:[#allocation2 + $0x38] sm:$0xff]
      %v514 = vadd.f32 %v506, %v507
      %v515 = vadd.f32 %v514, %v508
      %v516 = vadd.f32 %v515, %v509
      %v517 = vadd.f32 %v516, %v510
      %v518 = vadd.f32 %v517, %v511
      %v519 = vadd.f32 %v518, %v512
      %v520 = vadd.f32 %v519, %v513
      %521 = vadd.xlane.f32.xlu0 %v520
      %v522 = vpop.xlane.xlu0 %521
      %v523 = vrot.slane %v522, 4
      %v524 = vadd.f32 %v522, %v523
      %v525 = vrot.slane %v524, 2
      %v526 = vadd.f32 %v524, %v525
      %v527 = vrot.slane %v526, 1
      %v528 = vadd.f32 %v526, %v527
      %s529 = vtos %v528
      %s530 = smul.f32 %s529, 0.03125
      %s531 = scalar_lea.smem [#allocation8], 0
      %532 = sst [smem:[%s531]] %s530
    $region25: #{tpu_custom_call.1} parent=1 // pred_fallthru
      _
    // Predicated region
    $region26: #{tpu_custom_call.1} parent=1 // pred_check
      _
    $region27: #{tpu_custom_call.1} parent=1 // pred_check_branch
      %534 = sbr.rel (0) target = $region29
    $region28: #{tpu_custom_call.1} parent=1 // pred_region
      %s536 = ssub.s32 16, 16
      %537 = vsyncadd [#allocation5], %s536
      %540 = dma.smem_to_hbm [#allocation8], 16, %s2, [#allocation5]
    $region29: #{tpu_custom_call.1} parent=1 // pred_fallthru
      _
    // Predicated region
    $region30: #{tpu_custom_call.1} parent=1 // pred_check
      _
    $region31: #{tpu_custom_call.1} parent=1 // pred_check_branch
      %542 = sbr.rel (0) target = $region33
    $region32: #{tpu_custom_call.1} parent=1 // pred_region
      %543 = dma.done [#allocation5], 16
    $region33: #{tpu_custom_call.1} parent=1 // pred_fallthru
      _
    %544 = sfence
    %545 = vsyncpa [#allocation4], 1
    %546 = vsyncpa [#allocation7], 1
    %547 = vsyncpa [#allocation5], 1

</llo_original>
